<compile_context>
chip_gen: v6e
topology: v6e:2x2x1
jax: 0.10.0
libtpu: 0.0.40
codegen_flags: <defaults>
</compile_context>

<pallas_src>
import numpy as np
import jax
import jax.numpy as jnp
from jax.experimental import pallas as pl
from jax.experimental.pallas import tpu as pltpu


def _leaky_relu(x, slope=0.2):
    # One vmul + one vmax on the VPU (cheaper than jnp.where's cmp+select).
    return jnp.maximum(x, slope * x)


def generator_kernel(z_ref,
                     w1_ref, b1_ref,
                     w2_ref, b2_ref,
                     w3_ref, b3_ref,
                     w4_ref, b4_ref,
                     out_ref):
    # bf16 operands into the MXU, f32 accumulation, f32 epilogue.
    h = jnp.dot(z_ref[...], w1_ref[...], preferred_element_type=jnp.float32)
    h = _leaky_relu(h + b1_ref[...])

    h = jnp.dot(h.astype(jnp.bfloat16), w2_ref[...],
                preferred_element_type=jnp.float32)
    h = _leaky_relu(h + b2_ref[...])

    h = jnp.dot(h.astype(jnp.bfloat16), w3_ref[...],
                preferred_element_type=jnp.float32)
    h = _leaky_relu(h + b3_ref[...])

    h = jnp.dot(h.astype(jnp.bfloat16), w4_ref[...],
                preferred_element_type=jnp.float32)
    out_ref[...] = jnp.tanh(h + b4_ref[...])        # tanh -> EUP slot (idle otherwise)


def _round_up(x, m):
    return ((x + m - 1) // m) * m


def generator_forward(z, params, img_shape, tile_b=128):
    """z: [B, latent_dim] -> img: [B, *img_shape] float32.

    tile_b: batch rows per grid step (multiple of 8). For real workloads use
    >=128 (v5e) / >=256 (v6e, v7x) to fill the MXU M dimension; at demo sizes
    the kernel is bound by pallas_call fixed overhead regardless.
    """
    (w1, b1), (w2, b2), (w3, b3), (w4, b4) = params
    B, latent_dim = z.shape
    feats = w4.shape[1]

    # Pick a batch tile (multiple of 8 sublanes) and pad B up to it.
    tile_b = max(8, min(int(tile_b), _round_up(B, 8)))
    b_pad = _round_up(B, tile_b)

    z_bf16 = z.astype(jnp.bfloat16)
    if b_pad != B:
        z_bf16 = jnp.pad(z_bf16, ((0, b_pad - B), (0, 0)))

    grid = (b_pad // tile_b,)

    def resident(arr):
        # Full-array block + constant index_map -> fetched once, kept resident
        # in VMEM across all batch tiles.
        return pl.BlockSpec(arr.shape, lambda i: (0, 0))

    in_specs = [
        pl.BlockSpec((tile_b, latent_dim), lambda i: (i, 0)),   # z streams per tile
        resident(w1), resident(b1),
        resident(w2), resident(b2),
        resident(w3), resident(b3),
        resident(w4), resident(b4),
    ]
    out_specs = pl.BlockSpec((tile_b, feats), lambda i: (i, 0))  # lane-dense (256)

    layer_dims = [w1.shape, w2.shape, w3.shape, w4.shape]
    flops = 2 * b_pad * sum(int(fi) * int(fo) for (fi, fo) in layer_dims)
    weight_bytes = sum(int(w.size) * w.dtype.itemsize +
                       int(b.size) * b.dtype.itemsize for (w, b) in params)
    bytes_accessed = (int(z_bf16.size) * 2          # bf16 z in
                      + weight_bytes                # resident weights (read once)
                      + b_pad * feats * 4)          # f32 image out

    flat = pl.pallas_call(
        generator_kernel,
        out_shape=jax.ShapeDtypeStruct((b_pad, feats), jnp.float32),
        grid=grid,
        in_specs=in_specs,
        out_specs=out_specs,
        compiler_params=pltpu.CompilerParams(
            dimension_semantics=("parallel",)),     # shard tiles over v7x's 2 TCs
        cost_estimate=pl.CostEstimate(
            flops=flops,
            transcendentals=b_pad * feats,          # tanh
            bytes_accessed=bytes_accessed),
    )(z_bf16, w1, b1, w2, b2, w3, b3, w4, b4)

    return flat[:B].reshape((B,) + tuple(img_shape))


def init_params(key, latent_dim, hidden_dim, feats):
    """nn.Linear-style init.

    Weights stored as [in, out] in bf16 (MXU-native); biases as [1, out] f32
    so the bias+activation epilogue runs in f32.
    """
    dims = [
        (latent_dim, hidden_dim),
        (hidden_dim, hidden_dim * 2),
        (hidden_dim * 2, hidden_dim * 4),
        (hidden_dim * 4, feats),
    ]
    params = []
    for (fan_in, fan_out) in dims:
        key, kw, kb = jax.random.split(key, 3)
        bound = 1.0 / np.sqrt(fan_in)
        w = jax.random.uniform(kw, (fan_in, fan_out), jnp.float32, -bound, bound)
        b = jax.random.uniform(kb, (1, fan_out), jnp.float32, -bound, bound)
        params.append((w.astype(jnp.bfloat16), b))
    return params


def reference_forward(z, params, img_shape):
    """Pure-JAX reference of the PyTorch forward, mirroring the kernel's
    bf16-operand / f32-accumulate precision so the comparison is tight."""
    (w1, b1), (w2, b2), (w3, b3), (w4, b4) = params

    def dot16(x, w):
        return jnp.dot(x.astype(jnp.bfloat16), w,
                       preferred_element_type=jnp.float32)

    h = _leaky_relu(dot16(z, w1) + b1)
    h = _leaky_relu(dot16(h, w2) + b2)
    h = _leaky_relu(dot16(h, w3) + b3)
    img = jnp.tanh(dot16(h, w4) + b4)
    return img.reshape((z.shape[0],) + tuple(img_shape))


if __name__ == "__main__":
    batch = 16
    latent_dim = 32
    hidden_dim = 32
    img_shape = (1, 16, 16)           # NCHW image per sample
    feats = int(np.prod(img_shape))   # 256 (multiple of 128 -> unmasked stores)

    key = jax.random.PRNGKey(0)
    key, kz = jax.random.split(key)
    z = jax.random.normal(kz, (batch, latent_dim), jnp.float32)

    params = init_params(key, latent_dim, hidden_dim, feats)

    # tile_b=8 at this toy size so the batch grid (2 tiles) is exercised;
    # production sizes should use the default (>=128).
    img = generator_forward(z, params, img_shape, tile_b=8)
    img = jax.block_until_ready(img)

    ref = reference_forward(z, params, img_shape)
    np.testing.assert_allclose(np.asarray(img), np.asarray(ref),
                               rtol=2e-2, atol=2e-2)
    assert img.shape == (batch,) + img_shape
    print("KERNEL_OK")
</pallas_src>

<mosaic_0001>
module attributes {stable_mosaic.version = 11 : i64} {
  func.func @generator_kernel(%arg0: i32, %arg1: memref<8x32xbf16, #tpu.memory_space<vmem>>, %arg2: memref<32x32xbf16, #tpu.memory_space<vmem>>, %arg3: memref<1x32xf32, #tpu.memory_space<vmem>>, %arg4: memref<32x64xbf16, #tpu.memory_space<vmem>>, %arg5: memref<1x64xf32, #tpu.memory_space<vmem>>, %arg6: memref<64x128xbf16, #tpu.memory_space<vmem>>, %arg7: memref<1x128xf32, #tpu.memory_space<vmem>>, %arg8: memref<128x256xbf16, #tpu.memory_space<vmem>>, %arg9: memref<1x256xf32, #tpu.memory_space<vmem>>, %arg10: memref<8x256xf32, #tpu.memory_space<vmem>>) attributes {dimension_semantics = [#tpu.dimension_semantics<parallel>], iteration_bounds = array<i64: 2>, scalar_prefetch = 0 : i64, scratch_operands = 0 : i64, tpu.core_type = #tpu.core_type<tc>, window_params = [{transform_indices = @transform_0, window_bounds = array<i64: 8, 32>}, {pipeline_mode = #tpu.pipeline_mode<synchronous>, transform_indices = @transform_1, window_bounds = array<i64: 32, 32>}, {pipeline_mode = #tpu.pipeline_mode<synchronous>, transform_indices = @transform_2, window_bounds = array<i64: 1, 32>}, {pipeline_mode = #tpu.pipeline_mode<synchronous>, transform_indices = @transform_3, window_bounds = array<i64: 32, 64>}, {pipeline_mode = #tpu.pipeline_mode<synchronous>, transform_indices = @transform_4, window_bounds = array<i64: 1, 64>}, {pipeline_mode = #tpu.pipeline_mode<synchronous>, transform_indices = @transform_5, window_bounds = array<i64: 64, 128>}, {pipeline_mode = #tpu.pipeline_mode<synchronous>, transform_indices = @transform_6, window_bounds = array<i64: 1, 128>}, {pipeline_mode = #tpu.pipeline_mode<synchronous>, transform_indices = @transform_7, window_bounds = array<i64: 128, 256>}, {pipeline_mode = #tpu.pipeline_mode<synchronous>, transform_indices = @transform_8, window_bounds = array<i64: 1, 256>}, {transform_indices = @transform_9, window_bounds = array<i64: 8, 256>}]} {
    %c0 = arith.constant 0 : index
    %c0_0 = arith.constant 0 : index
    %0 = vector.load %arg1[%c0, %c0_0] : memref<8x32xbf16, #tpu.memory_space<vmem>>, vector<8x32xbf16>
    %c0_1 = arith.constant 0 : index
    %c0_2 = arith.constant 0 : index
    %1 = vector.load %arg2[%c0_1, %c0_2] : memref<32x32xbf16, #tpu.memory_space<vmem>>, vector<32x32xbf16>
    %cst = arith.constant dense<0.000000e+00> : vector<8x32xf32>
    %2 = tpu.matmul %0, %1, %cst {dimension_numbers = #tpu.dot_dimension_numbers<[1], [0], [0], [1], [0, 0, 1, 1], [], []>} : vector<8x32xbf16>, vector<32x32xbf16>, vector<8x32xf32> -> vector<8x32xf32>
    %c0_3 = arith.constant 0 : index
    %c0_4 = arith.constant 0 : index
    %3 = vector.load %arg3[%c0_3, %c0_4] : memref<1x32xf32, #tpu.memory_space<vmem>>, vector<1x32xf32>
    %4 = vector.broadcast %3 : vector<1x32xf32> to vector<8x32xf32>
    %5 = arith.addf %2, %4 : vector<8x32xf32>
    %cst_5 = arith.constant 2.000000e-01 : f32
    %6 = vector.broadcast %cst_5 : f32 to vector<8x32xf32>
    %7 = arith.mulf %6, %5 : vector<8x32xf32>
    %8 = arith.maximumf %5, %7 : vector<8x32xf32>
    %9 = arith.truncf %8 : vector<8x32xf32> to vector<8x32xbf16>
    %c0_6 = arith.constant 0 : index
    %c0_7 = arith.constant 0 : index
    %10 = vector.load %arg4[%c0_6, %c0_7] : memref<32x64xbf16, #tpu.memory_space<vmem>>, vector<32x64xbf16>
    %cst_8 = arith.constant dense<0.000000e+00> : vector<8x64xf32>
    %11 = tpu.matmul %9, %10, %cst_8 {dimension_numbers = #tpu.dot_dimension_numbers<[1], [0], [0], [1], [0, 0, 1, 1], [], []>} : vector<8x32xbf16>, vector<32x64xbf16>, vector<8x64xf32> -> vector<8x64xf32>
    %c0_9 = arith.constant 0 : index
    %c0_10 = arith.constant 0 : index
    %12 = vector.load %arg5[%c0_9, %c0_10] : memref<1x64xf32, #tpu.memory_space<vmem>>, vector<1x64xf32>
    %13 = vector.broadcast %12 : vector<1x64xf32> to vector<8x64xf32>
    %14 = arith.addf %11, %13 : vector<8x64xf32>
    %cst_11 = arith.constant 2.000000e-01 : f32
    %15 = vector.broadcast %cst_11 : f32 to vector<8x64xf32>
    %16 = arith.mulf %15, %14 : vector<8x64xf32>
    %17 = arith.maximumf %14, %16 : vector<8x64xf32>
    %18 = arith.truncf %17 : vector<8x64xf32> to vector<8x64xbf16>
    %c0_12 = arith.constant 0 : index
    %c0_13 = arith.constant 0 : index
    %19 = vector.load %arg6[%c0_12, %c0_13] : memref<64x128xbf16, #tpu.memory_space<vmem>>, vector<64x128xbf16>
    %cst_14 = arith.constant dense<0.000000e+00> : vector<8x128xf32>
    %20 = tpu.matmul %18, %19, %cst_14 {dimension_numbers = #tpu.dot_dimension_numbers<[1], [0], [0], [1], [0, 0, 1, 1], [], []>} : vector<8x64xbf16>, vector<64x128xbf16>, vector<8x128xf32> -> vector<8x128xf32>
    %c0_15 = arith.constant 0 : index
    %c0_16 = arith.constant 0 : index
    %21 = vector.load %arg7[%c0_15, %c0_16] : memref<1x128xf32, #tpu.memory_space<vmem>>, vector<1x128xf32>
    %22 = vector.broadcast %21 : vector<1x128xf32> to vector<8x128xf32>
    %23 = arith.addf %20, %22 : vector<8x128xf32>
    %cst_17 = arith.constant 2.000000e-01 : f32
    %24 = vector.broadcast %cst_17 : f32 to vector<8x128xf32>
    %25 = arith.mulf %24, %23 : vector<8x128xf32>
    %26 = arith.maximumf %23, %25 : vector<8x128xf32>
    %27 = arith.truncf %26 : vector<8x128xf32> to vector<8x128xbf16>
    %c0_18 = arith.constant 0 : index
    %c0_19 = arith.constant 0 : index
    %28 = vector.load %arg8[%c0_18, %c0_19] : memref<128x256xbf16, #tpu.memory_space<vmem>>, vector<128x256xbf16>
    %cst_20 = arith.constant dense<0.000000e+00> : vector<8x256xf32>
    %29 = tpu.matmul %27, %28, %cst_20 {dimension_numbers = #tpu.dot_dimension_numbers<[1], [0], [0], [1], [0, 0, 1, 1], [], []>} : vector<8x128xbf16>, vector<128x256xbf16>, vector<8x256xf32> -> vector<8x256xf32>
    %c0_21 = arith.constant 0 : index
    %c0_22 = arith.constant 0 : index
    %30 = vector.load %arg9[%c0_21, %c0_22] : memref<1x256xf32, #tpu.memory_space<vmem>>, vector<1x256xf32>
    %31 = vector.broadcast %30 : vector<1x256xf32> to vector<8x256xf32>
    %32 = arith.addf %29, %31 : vector<8x256xf32>
    %33 = math.tanh %32 : vector<8x256xf32>
    %c0_23 = arith.constant 0 : index
    %c0_24 = arith.constant 0 : index
    %34 = vector.load %arg10[%c0_23, %c0_24] : memref<8x256xf32, #tpu.memory_space<vmem>>, vector<8x256xf32>
    tpu.vector_store %arg10[%c0_23, %c0_24], %33 {strides = array<i32>} : memref<8x256xf32, #tpu.memory_space<vmem>>, vector<8x256xf32>,
    return
  }
  func.func @transform_0(%arg0: i32) -> (i32, i32) {
    %c0_i32 = arith.constant 0 : i32
    %c0_i32_0 = arith.constant 0 : i32
    return %arg0, %c0_i32 : i32, i32
  }
  func.func @transform_1(%arg0: i32) -> (i32, i32) {
    %c0_i32 = arith.constant 0 : i32
    %c0_i32_0 = arith.constant 0 : i32
    %c0_i32_1 = arith.constant 0 : i32
    return %c0_i32, %c0_i32_0 : i32, i32
  }
  func.func @transform_2(%arg0: i32) -> (i32, i32) {
    %c0_i32 = arith.constant 0 : i32
    %c0_i32_0 = arith.constant 0 : i32
    %c0_i32_1 = arith.constant 0 : i32
    return %c0_i32, %c0_i32_0 : i32, i32
  }
  func.func @transform_3(%arg0: i32) -> (i32, i32) {
    %c0_i32 = arith.constant 0 : i32
    %c0_i32_0 = arith.constant 0 : i32
    %c0_i32_1 = arith.constant 0 : i32
    return %c0_i32, %c0_i32_0 : i32, i32
  }
  func.func @transform_4(%arg0: i32) -> (i32, i32) {
    %c0_i32 = arith.constant 0 : i32
    %c0_i32_0 = arith.constant 0 : i32
    %c0_i32_1 = arith.constant 0 : i32
    return %c0_i32, %c0_i32_0 : i32, i32
  }
  func.func @transform_5(%arg0: i32) -> (i32, i32) {
    %c0_i32 = arith.constant 0 : i32
    %c0_i32_0 = arith.constant 0 : i32
    %c0_i32_1 = arith.constant 0 : i32
    return %c0_i32, %c0_i32_0 : i32, i32
  }
  func.func @transform_6(%arg0: i32) -> (i32, i32) {
    %c0_i32 = arith.constant 0 : i32
    %c0_i32_0 = arith.constant 0 : i32
    %c0_i32_1 = arith.constant 0 : i32
    return %c0_i32, %c0_i32_0 : i32, i32
  }
  func.func @transform_7(%arg0: i32) -> (i32, i32) {
    %c0_i32 = arith.constant 0 : i32
    %c0_i32_0 = arith.constant 0 : i32
    %c0_i32_1 = arith.constant 0 : i32
    return %c0_i32, %c0_i32_0 : i32, i32
  }
  func.func @transform_8(%arg0: i32) -> (i32, i32) {
    %c0_i32 = arith.constant 0 : i32
    %c0_i32_0 = arith.constant 0 : i32
    %c0_i32_1 = arith.constant 0 : i32
    return %c0_i32, %c0_i32_0 : i32, i32
  }
  func.func @transform_9(%arg0: i32) -> (i32, i32) {
    %c0_i32 = arith.constant 0 : i32
    %c0_i32_0 = arith.constant 0 : i32
    return %arg0, %c0_i32 : i32, i32
  }
}

</mosaic_0001>

<llo_original>
// kernel: tpu_custom_call.1
$region0: #{tpu_custom_call.1}
  #allocation0 [shape = 'u32[]', space=smem, size = 0x4, offset = 0x4, fixed_abs, tag = 'smem constant byte address 0x4 - core index']
  #allocation1 [shape = 'u32[144,128]{1,0:T(1,128)}', space=vmem, size = 0x12000, scoped, tag = 'internal scratch']
  %s0 = inlined_call_operand.hbm [shape: bf16[16,32], index: 0, kind: input, shape index: {}]
  %s1 = inlined_call_operand.hbm [shape: bf16[32,32], index: 1, kind: input, shape index: {}]
  %s2 = inlined_call_operand.vmem [shape: f32[1,32], index: 2, kind: input, shape index: {}]
  %s3 = inlined_call_operand.hbm [shape: bf16[32,64], index: 3, kind: input, shape index: {}]
  %s4 = inlined_call_operand.vmem [shape: f32[1,64], index: 4, kind: input, shape index: {}]
  %s5 = inlined_call_operand.hbm [shape: bf16[64,128], index: 5, kind: input, shape index: {}]
  %s6 = inlined_call_operand.vmem [shape: f32[1,128], index: 6, kind: input, shape index: {}]
  %s7 = inlined_call_operand.hbm [shape: bf16[128,256], index: 7, kind: input, shape index: {}]
  %s8 = inlined_call_operand.vmem [shape: f32[1,256], index: 8, kind: input, shape index: {}]
  %s9 = inlined_call_operand.hbm [shape: f32[16,256], index: 9, kind: output, shape index: {}]
  %s10 = sld [smem:[#allocation0]]
  $region89: #{tpu_custom_call.1} parent=0
    _
  %s12 = ssub.s32 1, %s10
  %s13 = scalar_select 0, %s12, %s10
  $region1: #{tpu_custom_call.1} parent=0
    #allocation2 [shape = 'u8[4096]{0}', space=vmem, size = 0x1000, scoped, tag = 'input window, operand 0']
    #allocation3 [shape = 's32[2]{0}', space=sflag, size = 0x8, scoped, tag = 'scoped memory for tpu_custom_call.1']
    #allocation4 [shape = 's32[2]{0}', space=sflag, size = 0x8, scoped, tag = 'scoped memory for tpu_custom_call.1']
    #allocation5 [shape = 'u8[8192]{0}', space=vmem, size = 0x2000, scoped, tag = 'input window, operand 1, single buffered']
    #allocation6 [shape = 's32[1]{0}', space=sflag, size = 0x4, scoped, tag = 'scoped memory for tpu_custom_call.1']
    #allocation7 [shape = 'u8[8192]{0}', space=vmem, size = 0x2000, scoped, tag = 'input window, operand 3, single buffered']
    #allocation8 [shape = 'u8[16384]{0}', space=vmem, size = 0x4000, scoped, tag = 'input window, operand 5, single buffered']
    #allocation9 [shape = 's32[1]{0}', space=sflag, size = 0x4, scoped, tag = 'scoped memory for tpu_custom_call.1']
    #allocation10 [shape = 'u8[65536]{0}', space=vmem, size = 0x10000, scoped, tag = 'input window, operand 7, single buffered']
    #allocation11 [shape = 'u8[16384]{0}', space=vmem, size = 0x4000, scoped, tag = 'output window, operand 0']
    %14 = vsyncpa [#allocation3], 0
    %s15 = scalar_lea.sflag [#allocation3], 1
    %16 = vsyncpa %s15, 0
    %17 = vsyncpa [#allocation6], 0
    %18 = vsyncpa [#allocation9], 0
    %19 = vsyncpa [#allocation4], 0
    %s20 = scalar_lea.sflag [#allocation4], 1
    %21 = vsyncpa %s20, 0
    loop: start=0, step=1, limit=4
    $region2: #{tpu_custom_call.1} parent=1 // loop_pre_header
      _
    $region3: #{tpu_custom_call.1} parent=1 // loop_header
      %s23 = sphi 0, %s27
      %p24 = scmp.ge.s32.totalorder %s23, 4
      %s33 = sphi 0, %s35
      %s36 = sphi 0, %s33
      %s37 = sphi 0, %s36
      %s53 = sphi 0, %s37
      %s57 = sphi 0, %s57
      %s59 = sphi 0, %s57
      %s60 = sphi 0, %s59
      %s74 = sphi 0, %s60
      %s78 = sphi 0, %s78
      %s80 = sphi 0, %s78
      %s81 = sphi 0, %s80
      %s95 = sphi 0, %s81
      %s99 = sphi 0, %s99
      %s101 = sphi 0, %s99
      %s102 = sphi 0, %s101
      %s116 = sphi 0, %s102
      %s120 = sphi 0, %s120
      %s122 = sphi 0, %s120
      %s123 = sphi 0, %s122
      %s137 = sphi 0, %s123
      %s141 = sphi 0, %s141
      %s143 = sphi 0, %s141
      %s144 = sphi 0, %s143
      %s158 = sphi 0, %s144
      %s162 = sphi 0, %s162
      %s164 = sphi 0, %s162
      %s165 = sphi 0, %s164
      %s179 = sphi 0, %s165
      %s183 = sphi 0, %s183
      %s185 = sphi 0, %s183
      %s186 = sphi 0, %s185
      %s200 = sphi 0, %s186
      %s204 = sphi 0, %s204
      %s206 = sphi 0, %s204
      %s207 = sphi 0, %s206
      %s221 = sphi 0, %s207
      %s227 = sphi 0, %s229
      %s230 = sphi 0, %s227
      %s231 = sphi 0, %s230
      %s247 = sphi 0, %s231
    $region4: #{tpu_custom_call.1} parent=1 // loop_header_branch
      %26 = sbr.rel (%p24) target = $region8
    $region5: #{tpu_custom_call.1} parent=1 // loop_body
      %s28 = ssub.s32 %s23, 1
      %s29 = ssub.s32 %s23, 2
      %s30 = sadd.s32 %s23, 1
      %s31 = ssub.s32 %s23, %s30
      %p32 = scmp.eq.s32.totalorder %s31, 0
      %s34 = sadd.s32 %s33, 1
      %s35 = scalar_select %p32, %s33, %s34
      %p38 = pneg %p32
      %p39 = scmp.eq.s32.totalorder %s23, 1
      %p40 = por %p38, %p39
      %p41 = scmp.ne.s32.totalorder %s33, %s36
      %p42 = scmp.eq.s32.totalorder %s23, 0
      %p43 = por %p41, %p42
      %p44 = scmp.ne.s32.totalorder %s33, %s36
      %p45 = scmp.eq.s32.totalorder %s28, 1
      %p46 = por %p44, %p45
      %p47 = scmp.ne.s32.totalorder %s36, %s37
      %p48 = scmp.eq.s32.totalorder %s28, 0
      %p49 = por %p47, %p48
      %p50 = scmp.ne.s32.totalorder %s36, %s37
      %p51 = scmp.eq.s32.totalorder %s29, 1
      %p52 = por %p50, %p51
      %p54 = scmp.ne.s32.totalorder %s37, %s53
      %p55 = scmp.eq.s32.totalorder %s29, 0
      %p56 = por %p54, %p55
      %s58 = sadd.s32 %s57, 1
      %p61 = scmp.eq.s32.totalorder %s23, 1
      %p62 = scmp.ne.s32.totalorder %s57, %s59
      %p63 = scmp.eq.s32.totalorder %s23, 0
      %p64 = por %p62, %p63
      %p65 = scmp.ne.s32.totalorder %s57, %s59
      %p66 = scmp.eq.s32.totalorder %s28, 1
      %p67 = por %p65, %p66
      %p68 = scmp.ne.s32.totalorder %s59, %s60
      %p69 = scmp.eq.s32.totalorder %s28, 0
      %p70 = por %p68, %p69
      %p71 = scmp.ne.s32.totalorder %s59, %s60
      %p72 = scmp.eq.s32.totalorder %s29, 1
      %p73 = por %p71, %p72
      %p75 = scmp.ne.s32.totalorder %s60, %s74
      %p76 = scmp.eq.s32.totalorder %s29, 0
      %p77 = por %p75, %p76
      %s79 = sadd.s32 %s78, 1
      %p82 = scmp.eq.s32.totalorder %s23, 1
      %p83 = scmp.ne.s32.totalorder %s78, %s80
      %p84 = scmp.eq.s32.totalorder %s23, 0
      %p85 = por %p83, %p84
      %p86 = scmp.ne.s32.totalorder %s78, %s80
      %p87 = scmp.eq.s32.totalorder %s28, 1
      %p88 = por %p86, %p87
      %p89 = scmp.ne.s32.totalorder %s80, %s81
      %p90 = scmp.eq.s32.totalorder %s28, 0
      %p91 = por %p89, %p90
      %p92 = scmp.ne.s32.totalorder %s80, %s81
      %p93 = scmp.eq.s32.totalorder %s29, 1
      %p94 = por %p92, %p93
      %p96 = scmp.ne.s32.totalorder %s81, %s95
      %p97 = scmp.eq.s32.totalorder %s29, 0
      %p98 = por %p96, %p97
      %s100 = sadd.s32 %s99, 1
      %p103 = scmp.eq.s32.totalorder %s23, 1
      %p104 = scmp.ne.s32.totalorder %s99, %s101
      %p105 = scmp.eq.s32.totalorder %s23, 0
      %p106 = por %p104, %p105
      %p107 = scmp.ne.s32.totalorder %s99, %s101
      %p108 = scmp.eq.s32.totalorder %s28, 1
      %p109 = por %p107, %p108
      %p110 = scmp.ne.s32.totalorder %s101, %s102
      %p111 = scmp.eq.s32.totalorder %s28, 0
      %p112 = por %p110, %p111
      %p113 = scmp.ne.s32.totalorder %s101, %s102
      %p114 = scmp.eq.s32.totalorder %s29, 1
      %p115 = por %p113, %p114
      %p117 = scmp.ne.s32.totalorder %s102, %s116
      %p118 = scmp.eq.s32.totalorder %s29, 0
      %p119 = por %p117, %p118
      %s121 = sadd.s32 %s120, 1
      %p124 = scmp.eq.s32.totalorder %s23, 1
      %p125 = scmp.ne.s32.totalorder %s120, %s122
      %p126 = scmp.eq.s32.totalorder %s23, 0
      %p127 = por %p125, %p126
      %p128 = scmp.ne.s32.totalorder %s120, %s122
      %p129 = scmp.eq.s32.totalorder %s28, 1
      %p130 = por %p128, %p129
      %p131 = scmp.ne.s32.totalorder %s122, %s123
      %p132 = scmp.eq.s32.totalorder %s28, 0
      %p133 = por %p131, %p132
      %p134 = scmp.ne.s32.totalorder %s122, %s123
      %p135 = scmp.eq.s32.totalorder %s29, 1
      %p136 = por %p134, %p135
      %p138 = scmp.ne.s32.totalorder %s123, %s137
      %p139 = scmp.eq.s32.totalorder %s29, 0
      %p140 = por %p138, %p139
      %s142 = sadd.s32 %s141, 1
      %p145 = scmp.eq.s32.totalorder %s23, 1
      %p146 = scmp.ne.s32.totalorder %s141, %s143
      %p147 = scmp.eq.s32.totalorder %s23, 0
      %p148 = por %p146, %p147
      %p149 = scmp.ne.s32.totalorder %s141, %s143
      %p150 = scmp.eq.s32.totalorder %s28, 1
      %p151 = por %p149, %p150
      %p152 = scmp.ne.s32.totalorder %s143, %s144
      %p153 = scmp.eq.s32.totalorder %s28, 0
      %p154 = por %p152, %p153
      %p155 = scmp.ne.s32.totalorder %s143, %s144
      %p156 = scmp.eq.s32.totalorder %s29, 1
      %p157 = por %p155, %p156
      %p159 = scmp.ne.s32.totalorder %s144, %s158
      %p160 = scmp.eq.s32.totalorder %s29, 0
      %p161 = por %p159, %p160
      %s163 = sadd.s32 %s162, 1
      %p166 = scmp.eq.s32.totalorder %s23, 1
      %p167 = scmp.ne.s32.totalorder %s162, %s164
      %p168 = scmp.eq.s32.totalorder %s23, 0
      %p169 = por %p167, %p168
      %p170 = scmp.ne.s32.totalorder %s162, %s164
      %p171 = scmp.eq.s32.totalorder %s28, 1
      %p172 = por %p170, %p171
      %p173 = scmp.ne.s32.totalorder %s164, %s165
      %p174 = scmp.eq.s32.totalorder %s28, 0
      %p175 = por %p173, %p174
      %p176 = scmp.ne.s32.totalorder %s164, %s165
      %p177 = scmp.eq.s32.totalorder %s29, 1
      %p178 = por %p176, %p177
      %p180 = scmp.ne.s32.totalorder %s165, %s179
      %p181 = scmp.eq.s32.totalorder %s29, 0
      %p182 = por %p180, %p181
      %s184 = sadd.s32 %s183, 1
      %p187 = scmp.eq.s32.totalorder %s23, 1
      %p188 = scmp.ne.s32.totalorder %s183, %s185
      %p189 = scmp.eq.s32.totalorder %s23, 0
      %p190 = por %p188, %p189
      %p191 = scmp.ne.s32.totalorder %s183, %s185
      %p192 = scmp.eq.s32.totalorder %s28, 1
      %p193 = por %p191, %p192
      %p194 = scmp.ne.s32.totalorder %s185, %s186
      %p195 = scmp.eq.s32.totalorder %s28, 0
      %p196 = por %p194, %p195
      %p197 = scmp.ne.s32.totalorder %s185, %s186
      %p198 = scmp.eq.s32.totalorder %s29, 1
      %p199 = por %p197, %p198
      %p201 = scmp.ne.s32.totalorder %s186, %s200
      %p202 = scmp.eq.s32.totalorder %s29, 0
      %p203 = por %p201, %p202
      %s205 = sadd.s32 %s204, 1
      %p208 = scmp.eq.s32.totalorder %s23, 1
      %p209 = scmp.ne.s32.totalorder %s204, %s206
      %p210 = scmp.eq.s32.totalorder %s23, 0
      %p211 = por %p209, %p210
      %p212 = scmp.ne.s32.totalorder %s204, %s206
      %p213 = scmp.eq.s32.totalorder %s28, 1
      %p214 = por %p212, %p213
      %p215 = scmp.ne.s32.totalorder %s206, %s207
      %p216 = scmp.eq.s32.totalorder %s28, 0
      %p217 = por %p215, %p216
      %p218 = scmp.ne.s32.totalorder %s206, %s207
      %p219 = scmp.eq.s32.totalorder %s29, 1
      %p220 = por %p218, %p219
      %p222 = scmp.ne.s32.totalorder %s207, %s221
      %p223 = scmp.eq.s32.totalorder %s29, 0
      %p224 = por %p222, %p223
      %s225 = ssub.s32 %s23, %s30
      %p226 = scmp.eq.s32.totalorder %s225, 0
      %s228 = sadd.s32 %s227, 1
      %s229 = scalar_select %p226, %s227, %s228
      %p232 = pneg %p226
      %p233 = scmp.eq.s32.totalorder %s23, 1
      %p234 = por %p232, %p233
      %p235 = scmp.ne.s32.totalorder %s227, %s230
      %p236 = scmp.eq.s32.totalorder %s23, 0
      %p237 = por %p235, %p236
      %p238 = scmp.ne.s32.totalorder %s227, %s230
      %p239 = scmp.eq.s32.totalorder %s28, 1
      %p240 = por %p238, %p239
      %p241 = scmp.ne.s32.totalorder %s230, %s231
      %p242 = scmp.eq.s32.totalorder %s28, 0
      %p243 = por %p241, %p242
      %p244 = scmp.ne.s32.totalorder %s230, %s231
      %p245 = scmp.eq.s32.totalorder %s29, 1
      %p246 = por %p244, %p245
      %p248 = scmp.ne.s32.totalorder %s231, %s247
      %p249 = scmp.eq.s32.totalorder %s29, 0
      %p250 = por %p248, %p249
      %p251 = scmp.le.s32.totalorder 1, %s23
      %p252 = scmp.lt.s32.totalorder %s23, 3
      %p253 = pnand %p251, %p252
      %p254 = pneg %p253
      // Predicated region
      $region9: #{tpu_custom_call.1} parent=5 // pred_check
        _
      $region10: #{tpu_custom_call.1} parent=5 // pred_check_branch
        %256 = sbr.rel (%p253) target = $region12
      $region11: #{tpu_custom_call.1} parent=5 // pred_region
        %s257 = ssub.s32 %s23, 1
        // Predicated region
        $region13: #{tpu_custom_call.1} parent=11 // pred_check
          %p258 = pneg %p70
        $region14: #{tpu_custom_call.1} parent=11 // pred_check_branch
          %260 = sbr.rel (%p258) target = $region16
        $region15: #{tpu_custom_call.1} parent=11 // pred_region
          %s262 = ssub.s32 256, 256
          %263 = vsyncadd [#allocation6], %s262
          %s264 = sshll.u32 [#allocation5], 4
          %s265 = int_to_ptr.vmem [resolvable:$true] %s264
          %270 = dma.hbm_to_vmem [thread:$0]  %s1, 256, %s265, [#allocation6], 64, 64, 4
        $region16: #{tpu_custom_call.1} parent=11 // pred_fallthru
          _
        // Predicated region
        $region17: #{tpu_custom_call.1} parent=11 // pred_check
          %p271 = pneg %p91
        $region18: #{tpu_custom_call.1} parent=11 // pred_check_branch
          %273 = sbr.rel (%p271) target = $region20
        $region19: #{tpu_custom_call.1} parent=11 // pred_region
          _
        $region20: #{tpu_custom_call.1} parent=11 // pred_fallthru
          _
        // Predicated region
        $region21: #{tpu_custom_call.1} parent=11 // pred_check
          %p274 = pneg %p112
        $region22: #{tpu_custom_call.1} parent=11 // pred_check_branch
          %276 = sbr.rel (%p274) target = $region24
        $region23: #{tpu_custom_call.1} parent=11 // pred_region
          %s278 = ssub.s32 256, 256
          %279 = vsyncadd [#allocation6], %s278
          %s280 = sshll.u32 [#allocation7], 4
          %s281 = int_to_ptr.vmem [resolvable:$true] %s280
          %286 = dma.hbm_to_vmem [thread:$0]  %s3, 256, %s281, [#allocation6], 64, 64, 4
        $region24: #{tpu_custom_call.1} parent=11 // pred_fallthru
          _
        // Predicated region
        $region25: #{tpu_custom_call.1} parent=11 // pred_check
          %p287 = pneg %p133
        $region26: #{tpu_custom_call.1} parent=11 // pred_check_branch
          %289 = sbr.rel (%p287) target = $region28
        $region27: #{tpu_custom_call.1} parent=11 // pred_region
          _
        $region28: #{tpu_custom_call.1} parent=11 // pred_fallthru
          _
        // Predicated region
        $region29: #{tpu_custom_call.1} parent=11 // pred_check
          %p290 = pneg %p154
        $region30: #{tpu_custom_call.1} parent=11 // pred_check_branch
          %292 = sbr.rel (%p290) target = $region32
        $region31: #{tpu_custom_call.1} parent=11 // pred_region
          %s294 = ssub.s32 512, 512
          %295 = vsyncadd [#allocation9], %s294
          %s296 = sshll.u32 [#allocation8], 4
          %s297 = int_to_ptr.vmem [resolvable:$true] %s296
          %302 = dma.hbm_to_vmem [thread:$0]  %s5, 512, %s297, [#allocation9], 64, 64, 4
        $region32: #{tpu_custom_call.1} parent=11 // pred_fallthru
          _
        // Predicated region
        $region33: #{tpu_custom_call.1} parent=11 // pred_check
          %p303 = pneg %p175
        $region34: #{tpu_custom_call.1} parent=11 // pred_check_branch
          %305 = sbr.rel (%p303) target = $region36
        $region35: #{tpu_custom_call.1} parent=11 // pred_region
          _
        $region36: #{tpu_custom_call.1} parent=11 // pred_fallthru
          _
        // Predicated region
        $region37: #{tpu_custom_call.1} parent=11 // pred_check
          %p306 = pneg %p196
        $region38: #{tpu_custom_call.1} parent=11 // pred_check_branch
          %308 = sbr.rel (%p306) target = $region40
        $region39: #{tpu_custom_call.1} parent=11 // pred_region
          %s310 = ssub.s32 2048, 2048
          %311 = vsyncadd [#allocation9], %s310
          %s312 = sshll.u32 [#allocation10], 4
          %s313 = int_to_ptr.vmem [resolvable:$true] %s312
          %318 = dma.hbm_to_vmem [thread:$0]  %s7, 2048, %s313, [#allocation9], 128, 128, 8
        $region40: #{tpu_custom_call.1} parent=11 // pred_fallthru
          _
        // Predicated region
        $region41: #{tpu_custom_call.1} parent=11 // pred_check
          %p319 = pneg %p217
        $region42: #{tpu_custom_call.1} parent=11 // pred_check_branch
          %321 = sbr.rel (%p319) target = $region44
        $region43: #{tpu_custom_call.1} parent=11 // pred_region
          _
        $region44: #{tpu_custom_call.1} parent=11 // pred_fallthru
          _
      $region12: #{tpu_custom_call.1} parent=5 // pred_fallthru
        _
      %p322 = scmp.lt.s32.totalorder %s23, 2
      // Predicated region
      $region45: #{tpu_custom_call.1} parent=5 // pred_check
        %p323 = pneg %p322
      $region46: #{tpu_custom_call.1} parent=5 // pred_check_branch
        %325 = sbr.rel (%p323) target = $region48
      $region47: #{tpu_custom_call.1} parent=5 // pred_region
        // Predicated region
        $region49: #{tpu_custom_call.1} parent=47 // pred_check
          %p326 = pneg %p43
        $region50: #{tpu_custom_call.1} parent=47 // pred_check_branch
          %328 = sbr.rel (%p326) target = $region52
        $region51: #{tpu_custom_call.1} parent=47 // pred_region
          %s329 = sand.u32 %s33, 1
          %s330 = scalar_lea.sflag [#allocation3], %s329
          %s331 = sand.u32 %s33, 1
          %s332 = smul.addr %s331, 4
          %s333 = scalar_lea.vmem [#allocation2], %s332
          %s335 = ssub.s32 64, 64
          %336 = vsyncadd %s330, %s335
          %s337 = smul.addr %s23, 64
          %s338 = scalar_lea.hbm %s0, %s337
          %s340 = sshll.u32 %s333, 4
          %s341 = int_to_ptr.vmem [resolvable:$true] %s340
          %343 = dma.hbm_to_vmem [thread:$0]  %s338, 64, %s341, %s330
        $region52: #{tpu_custom_call.1} parent=47 // pred_fallthru
          _
      $region48: #{tpu_custom_call.1} parent=5 // pred_fallthru
        _
      %p344 = scmp.le.s32.totalorder 1, %s23
      %p345 = scmp.lt.s32.totalorder %s23, 3
      %p346 = pnand %p344, %p345
      %p347 = pneg %p346
      // Predicated region
      $region53: #{tpu_custom_call.1} parent=5 // pred_check
        _
      $region54: #{tpu_custom_call.1} parent=5 // pred_check_branch
        %349 = sbr.rel (%p346) target = $region56
      $region55: #{tpu_custom_call.1} parent=5 // pred_region
        %s350 = ssub.s32 %s23, 1
        %s351 = sand.u32 %s36, 1
        %s352 = scalar_lea.sflag [#allocation3], %s351
        %s353 = sand.u32 %s36, 1
        %s354 = smul.addr %s353, 4
        %s355 = scalar_lea.vmem [#allocation2], %s354
        // Predicated region
        $region57: #{tpu_custom_call.1} parent=55 // pred_check
          %p356 = pneg %p49
        $region58: #{tpu_custom_call.1} parent=55 // pred_check_branch
          %358 = sbr.rel (%p356) target = $region60
        $region59: #{tpu_custom_call.1} parent=55 // pred_region
          %359 = dma.done %s352, 64
        $region60: #{tpu_custom_call.1} parent=55 // pred_fallthru
          _
        // Predicated region
        $region61: #{tpu_custom_call.1} parent=55 // pred_check
          %p360 = pneg %p70
        $region62: #{tpu_custom_call.1} parent=55 // pred_check_branch
          %362 = sbr.rel (%p360) target = $region64
        $region63: #{tpu_custom_call.1} parent=55 // pred_region
          %363 = dma.done [#allocation6], 256
        $region64: #{tpu_custom_call.1} parent=55 // pred_fallthru
          _
        // Predicated region
        $region65: #{tpu_custom_call.1} parent=55 // pred_check
          %p364 = pneg %p112
        $region66: #{tpu_custom_call.1} parent=55 // pred_check_branch
          %366 = sbr.rel (%p364) target = $region68
        $region67: #{tpu_custom_call.1} parent=55 // pred_region
          %367 = dma.done [#allocation6], 256
        $region68: #{tpu_custom_call.1} parent=55 // pred_fallthru
          _
        // Predicated region
        $region69: #{tpu_custom_call.1} parent=55 // pred_check
          %p368 = pneg %p154
        $region70: #{tpu_custom_call.1} parent=55 // pred_check_branch
          %370 = sbr.rel (%p368) target = $region72
        $region71: #{tpu_custom_call.1} parent=55 // pred_region
          %371 = dma.done [#allocation9], 512
        $region72: #{tpu_custom_call.1} parent=55 // pred_fallthru
          _
        // Predicated region
        $region73: #{tpu_custom_call.1} parent=55 // pred_check
          %p372 = pneg %p196
        $region74: #{tpu_custom_call.1} parent=55 // pred_check_branch
          %374 = sbr.rel (%p372) target = $region76
        $region75: #{tpu_custom_call.1} parent=55 // pred_region
          %375 = dma.done [#allocation9], 2048
        $region76: #{tpu_custom_call.1} parent=55 // pred_fallthru
          _
        %s376 = sand.u32 %s36, 1
        %s377 = scalar_lea.sflag [#allocation3], %s376
        %s378 = sand.u32 %s36, 1
        %s379 = smul.addr %s378, 4
        %s380 = scalar_lea.vmem [#allocation2], %s379
        %p381 = pneg %p49
        %p382 = pneg %p46
        %p383 = pneg %p70
        %p384 = pneg %p67
        %p385 = pneg %p91
        %p386 = pneg %p88
        %p387 = pneg %p112
        %p388 = pneg %p109
        %p389 = pneg %p133
        %p390 = pneg %p130
        %p391 = pneg %p154
        %p392 = pneg %p151
        %p393 = pneg %p175
        %p394 = pneg %p172
        %p395 = pneg %p196
        %p396 = pneg %p193
        %p397 = pneg %p217
        %p398 = pneg %p214
        %p399 = pneg %p243
        %p400 = pneg %p240
        %s401 = sand.u32 %s230, 1
        %s402 = scalar_lea.sflag [#allocation4], %s401
        %s403 = sand.u32 %s230, 1
        %s404 = smul.addr %s403, 16
        %s405 = scalar_lea.vmem [#allocation11], %s404
        %v407 = vld [vmem:[%s355] sm:$0xf]
        %v408 = vld [vmem:[#allocation5] sm:$0xf]
        %v409 = vld [vmem:[#allocation5 + $0x4] sm:$0xf]
        %v410 = vld [vmem:[#allocation5 + $0x8] sm:$0xf]
        %v411 = vld [vmem:[#allocation5 + $0xc] sm:$0xf]
        %v412 = vld [vmem:[%s2] sm:$0x1]
        %v414 = vlaneseq
        %v415 = vshrl.u32 %v414, 7
        %v416 = vsub.s32 0, %v415
        %v417 = vrot.slane %v412, %v416
        %v423 = vunpack.c.l.b16 %v408
        %v424 = vunpack.c.l.b16 %v409
        %v425 = vunpack.c.l.b16 %v410
        %v426 = vunpack.c.l.b16 %v411
        %v427 = vpack.c.b16 %v424, %v423
        %v428 = vpack.c.b16 %v426, %v425
        %vm431 = vcmask 261120
        %v433 = vsel %vm431, %v407, 0
        %435 = vmatprep.subr.bf16.mxu0 0
        %436 = vmatpush1.bf16.msra.mxu0 0
        %437 = vmatprep.subr.bf16.mxu0 0
        %438 = vmatpush1.bf16.msra.mxu0 0
        %439 = vmatprep.subr.bf16.mxu0 0
        %440 = vmatpush1.bf16.msra.mxu0 0
        %441 = vmatprep.subr.bf16.mxu0 0
        %442 = vmatpush1.bf16.msra.mxu0 0
        %443 = vmatprep.subr.bf16.mxu0 0
        %444 = vmatpush1.bf16.msra.mxu0 0
        %445 = vmatprep.subr.bf16.mxu0 0
        %446 = vmatpush1.bf16.msra.mxu0 0
        %447 = vmatprep.subr.bf16.mxu0 0
        %448 = vmatpush1.bf16.msra.mxu0 %v428
        %449 = vmatprep.subr.bf16.mxu0 0
        %450 = vmatpush1.bf16.msra.mxu0 %v427
        %451 = vmatprep.subr.bf16.mxu0 0
        %452 = vmatpush2.bf16.msra.mxu0 0
        %453 = vmatprep.subr.bf16.mxu0 0
        %454 = vmatpush2.bf16.msra.mxu0 0
        %455 = vmatprep.subr.bf16.mxu0 0
        %456 = vmatpush2.bf16.msra.mxu0 0
        %457 = vmatprep.subr.bf16.mxu0 0
        %458 = vmatpush2.bf16.msra.mxu0 0
        %459 = vmatprep.subr.bf16.mxu0 0
        %460 = vmatpush2.bf16.msra.mxu0 0
        %461 = vmatprep.subr.bf16.mxu0 0
        %462 = vmatpush2.bf16.msra.mxu0 0
        %463 = vmatprep.subr.bf16.mxu0 0
        %464 = vmatpush2.bf16.msra.mxu0 0
        %465 = vmatprep.subr.bf16.mxu0 0
        %466 = vmatpush2.bf16.msra.mxu0 0
        %467 = vmatprep.mubr.bf16.mxu0 0
        %468 = vmatmul.mubr.bf16.gmra.mxu0 %v433
        %v469 = vpop.f32.mrf.mxu0
        %v470 = vadd.f32 %v417, %v469
        %v471 = vpop.f32.mrf.mxu0
        %v472 = vpop.f32.mrf.mxu0
        %v473 = vpop.f32.mrf.mxu0
        %474 = vdwg.mxu0
        %v475 = vmul.f32 %v470, 0.2
        %v476 = vmax.f32 %v470, %v475
        %v477 = vpack.c.bf16 %v476, %v476
        %v478 = vld [vmem:[#allocation7] sm:$0xf]
        %v479 = vld [vmem:[#allocation7 + $0x4] sm:$0xf]
        %v480 = vld [vmem:[#allocation7 + $0x8] sm:$0xf]
        %v481 = vld [vmem:[#allocation7 + $0xc] sm:$0xf]
        %v482 = vld [vmem:[%s4] sm:$0x1]
        %v484 = vlaneseq
        %v485 = vshrl.u32 %v484, 7
        %v486 = vsub.s32 0, %v485
        %v487 = vrot.slane %v482, %v486
        %v493 = vunpack.c.l.b16 %v478
        %v494 = vunpack.c.l.b16 %v479
        %v495 = vunpack.c.l.b16 %v480
        %v496 = vunpack.c.l.b16 %v481
        %v497 = vpack.c.b16 %v494, %v493
        %v498 = vpack.c.b16 %v496, %v495
        %v502 = vsel %vm431, %v477, 0
        %504 = vmatprep.subr.bf16.mxu0 0
        %505 = vmatpush1.bf16.msra.mxu0 0
        %506 = vmatprep.subr.bf16.mxu0 0
        %507 = vmatpush1.bf16.msra.mxu0 0
        %508 = vmatprep.subr.bf16.mxu0 0
        %509 = vmatpush1.bf16.msra.mxu0 0
        %510 = vmatprep.subr.bf16.mxu0 0
        %511 = vmatpush1.bf16.msra.mxu0 0
        %512 = vmatprep.subr.bf16.mxu0 0
        %513 = vmatpush1.bf16.msra.mxu0 0
        %514 = vmatprep.subr.bf16.mxu0 0
        %515 = vmatpush1.bf16.msra.mxu0 0
        %516 = vmatprep.subr.bf16.mxu0 0
        %517 = vmatpush1.bf16.msra.mxu0 %v498
        %518 = vmatprep.subr.bf16.mxu0 0
        %519 = vmatpush1.bf16.msra.mxu0 %v497
        %520 = vmatprep.subr.bf16.mxu0 0
        %521 = vmatpush2.bf16.msra.mxu0 0
        %522 = vmatprep.subr.bf16.mxu0 0
        %523 = vmatpush2.bf16.msra.mxu0 0
        %524 = vmatprep.subr.bf16.mxu0 0
        %525 = vmatpush2.bf16.msra.mxu0 0
        %526 = vmatprep.subr.bf16.mxu0 0
        %527 = vmatpush2.bf16.msra.mxu0 0
        %528 = vmatprep.subr.bf16.mxu0 0
        %529 = vmatpush2.bf16.msra.mxu0 0
        %530 = vmatprep.subr.bf16.mxu0 0
        %531 = vmatpush2.bf16.msra.mxu0 0
        %532 = vmatprep.subr.bf16.mxu0 0
        %533 = vmatpush2.bf16.msra.mxu0 0
        %534 = vmatprep.subr.bf16.mxu0 0
        %535 = vmatpush2.bf16.msra.mxu0 0
        %536 = vmatprep.mubr.bf16.mxu0 0
        %537 = vmatmul.mubr.bf16.gmra.mxu0 %v502
        %v538 = vpop.f32.mrf.mxu0
        %v539 = vadd.f32 %v487, %v538
        %v540 = vpop.f32.mrf.mxu0
        %v541 = vpop.f32.mrf.mxu0
        %v542 = vpop.f32.mrf.mxu0
        %543 = vdwg.mxu0
        %v544 = vmul.f32 %v539, 0.2
        %v545 = vmax.f32 %v539, %v544
        %v546 = vpack.c.bf16 %v545, %v545
        %v547 = vld [vmem:[#allocation8] sm:$0xf]
        %v548 = vld [vmem:[#allocation8 + $0x4] sm:$0xf]
        %v549 = vld [vmem:[#allocation8 + $0x8] sm:$0xf]
        %v550 = vld [vmem:[#allocation8 + $0xc] sm:$0xf]
        %v551 = vld [vmem:[#allocation8 + $0x10] sm:$0xf]
        %v552 = vld [vmem:[#allocation8 + $0x14] sm:$0xf]
        %v553 = vld [vmem:[#allocation8 + $0x18] sm:$0xf]
        %v554 = vld [vmem:[#allocation8 + $0x1c] sm:$0xf]
        %v555 = vld [vmem:[%s6] sm:$0x1]
        %v557 = vlaneseq
        %v558 = vshrl.u32 %v557, 7
        %v559 = vsub.s32 0, %v558
        %v560 = vrot.slane %v555, %v559
        %v570 = vunpack.c.l.b16 %v547
        %v571 = vunpack.c.l.b16 %v548
        %v572 = vunpack.c.l.b16 %v549
        %v573 = vunpack.c.l.b16 %v550
        %v574 = vunpack.c.l.b16 %v551
        %v575 = vunpack.c.l.b16 %v552
        %v576 = vunpack.c.l.b16 %v553
        %v577 = vunpack.c.l.b16 %v554
        %v578 = vpack.c.b16 %v571, %v570
        %v579 = vpack.c.b16 %v573, %v572
        %v580 = vpack.c.b16 %v575, %v574
        %v581 = vpack.c.b16 %v577, %v576
        %vm586 = vcmask 523264
        %v588 = vsel %vm586, %v546, 0
        %590 = vmatprep.subr.bf16.mxu0 0
        %591 = vmatpush1.bf16.msra.mxu0 0
        %592 = vmatprep.subr.bf16.mxu0 0
        %593 = vmatpush1.bf16.msra.mxu0 0
        %594 = vmatprep.subr.bf16.mxu0 0
        %595 = vmatpush1.bf16.msra.mxu0 0
        %596 = vmatprep.subr.bf16.mxu0 0
        %597 = vmatpush1.bf16.msra.mxu0 0
        %598 = vmatprep.subr.bf16.mxu0 0
        %599 = vmatpush1.bf16.msra.mxu0 %v581
        %600 = vmatprep.subr.bf16.mxu0 0
        %601 = vmatpush1.bf16.msra.mxu0 %v580
        %602 = vmatprep.subr.bf16.mxu0 0
        %603 = vmatpush1.bf16.msra.mxu0 %v579
        %604 = vmatprep.subr.bf16.mxu0 0
        %605 = vmatpush1.bf16.msra.mxu0 %v578
        %606 = vmatprep.subr.bf16.mxu0 0
        %607 = vmatpush2.bf16.msra.mxu0 0
        %608 = vmatprep.subr.bf16.mxu0 0
        %609 = vmatpush2.bf16.msra.mxu0 0
        %610 = vmatprep.subr.bf16.mxu0 0
        %611 = vmatpush2.bf16.msra.mxu0 0
        %612 = vmatprep.subr.bf16.mxu0 0
        %613 = vmatpush2.bf16.msra.mxu0 0
        %614 = vmatprep.subr.bf16.mxu0 0
        %615 = vmatpush2.bf16.msra.mxu0 0
        %616 = vmatprep.subr.bf16.mxu0 0
        %617 = vmatpush2.bf16.msra.mxu0 0
        %618 = vmatprep.subr.bf16.mxu0 0
        %619 = vmatpush2.bf16.msra.mxu0 0
        %620 = vmatprep.subr.bf16.mxu0 0
        %621 = vmatpush2.bf16.msra.mxu0 0
        %622 = vmatprep.mubr.bf16.mxu0 0
        %623 = vmatmul.mubr.bf16.gmra.mxu0 %v588
        %v624 = vpop.f32.mrf.mxu0
        %v625 = vadd.f32 %v560, %v624
        %v626 = vpop.f32.mrf.mxu0
        %v627 = vpop.f32.mrf.mxu0
        %v628 = vpop.f32.mrf.mxu0
        %629 = vdwg.mxu0
        %v630 = vmul.f32 %v625, 0.2
        %v631 = vmax.f32 %v625, %v630
        %v632 = vpack.c.bf16 %v631, %v631
        %v633 = vld [vmem:[#allocation10] sm:$0xff]
        %v634 = vld [vmem:[#allocation10 + $0x8] sm:$0xff]
        %v635 = vld [vmem:[#allocation10 + $0x10] sm:$0xff]
        %v636 = vld [vmem:[#allocation10 + $0x18] sm:$0xff]
        %v637 = vld [vmem:[#allocation10 + $0x20] sm:$0xff]
        %v638 = vld [vmem:[#allocation10 + $0x28] sm:$0xff]
        %v639 = vld [vmem:[#allocation10 + $0x30] sm:$0xff]
        %v640 = vld [vmem:[#allocation10 + $0x38] sm:$0xff]
        %v641 = vld [vmem:[#allocation10 + $0x40] sm:$0xff]
        %v642 = vld [vmem:[#allocation10 + $0x48] sm:$0xff]
        %v643 = vld [vmem:[#allocation10 + $0x50] sm:$0xff]
        %v644 = vld [vmem:[#allocation10 + $0x58] sm:$0xff]
        %v645 = vld [vmem:[#allocation10 + $0x60] sm:$0xff]
        %v646 = vld [vmem:[#allocation10 + $0x68] sm:$0xff]
        %v647 = vld [vmem:[#allocation10 + $0x70] sm:$0xff]
        %v648 = vld [vmem:[#allocation10 + $0x78] sm:$0xff]
        %v649 = vld [vmem:[%s8] sm:$0x3]
        %v651 = vlaneseq
        %v652 = vshrl.u32 %v651, 7
        %v653 = vsub.s32 0, %v652
        %v654 = vrot.slane %v649, %v653
        %v655 = vlaneseq
        %v656 = vshrl.u32 %v655, 7
        %v657 = vsub.s32 1, %v656
        %v658 = vrot.slane %v649, %v657
        %v677 = vunpack.c.l.b16 %v633
        %v678 = vunpack.c.h.b16 %v633
        %v679 = vunpack.c.l.b16 %v634
        %v680 = vunpack.c.h.b16 %v634
        %v681 = vunpack.c.l.b16 %v635
        %v682 = vunpack.c.h.b16 %v635
        %v683 = vunpack.c.l.b16 %v636
        %v684 = vunpack.c.h.b16 %v636
        %v685 = vunpack.c.l.b16 %v637
        %v686 = vunpack.c.h.b16 %v637
        %v687 = vunpack.c.l.b16 %v638
        %v688 = vunpack.c.h.b16 %v638
        %v689 = vunpack.c.l.b16 %v639
        %v690 = vunpack.c.h.b16 %v639
        %v691 = vunpack.c.l.b16 %v640
        %v692 = vunpack.c.h.b16 %v640
        %v693 = vunpack.c.l.b16 %v641
        %v694 = vunpack.c.h.b16 %v641
        %v695 = vunpack.c.l.b16 %v642
        %v696 = vunpack.c.h.b16 %v642
        %v697 = vunpack.c.l.b16 %v643
        %v698 = vunpack.c.h.b16 %v643
        %v699 = vunpack.c.l.b16 %v644
        %v700 = vunpack.c.h.b16 %v644
        %v701 = vunpack.c.l.b16 %v645
        %v702 = vunpack.c.h.b16 %v645
        %v703 = vunpack.c.l.b16 %v646
        %v704 = vunpack.c.h.b16 %v646
        %v705 = vunpack.c.l.b16 %v647
        %v706 = vunpack.c.h.b16 %v647
        %v707 = vunpack.c.l.b16 %v648
        %v708 = vunpack.c.h.b16 %v648
        %v709 = vpack.c.b16 %v679, %v677
        %v710 = vpack.c.b16 %v680, %v678
        %v711 = vpack.c.b16 %v683, %v681
        %v712 = vpack.c.b16 %v684, %v682
        %v713 = vpack.c.b16 %v687, %v685
        %v714 = vpack.c.b16 %v688, %v686
        %v715 = vpack.c.b16 %v691, %v689
        %v716 = vpack.c.b16 %v692, %v690
        %v717 = vpack.c.b16 %v695, %v693
        %v718 = vpack.c.b16 %v696, %v694
        %v719 = vpack.c.b16 %v699, %v697
        %v720 = vpack.c.b16 %v700, %v698
        %v721 = vpack.c.b16 %v703, %v701
        %v722 = vpack.c.b16 %v704, %v702
        %v723 = vpack.c.b16 %v707, %v705
        %v724 = vpack.c.b16 %v708, %v706
        %741 = vmatprep.subr.bf16.mxu0 %v724
        %742 = vmatpush1.bf16.msra.mxu0 %v723
        %743 = vmatprep.subr.bf16.mxu0 %v722
        %744 = vmatpush1.bf16.msra.mxu0 %v721
        %745 = vmatprep.subr.bf16.mxu0 %v720
        %746 = vmatpush1.bf16.msra.mxu0 %v719
        %747 = vmatprep.subr.bf16.mxu0 %v718
        %748 = vmatpush1.bf16.msra.mxu0 %v717
        %749 = vmatprep.subr.bf16.mxu0 %v716
        %750 = vmatpush1.bf16.msra.mxu0 %v715
        %751 = vmatprep.subr.bf16.mxu0 %v714
        %752 = vmatpush1.bf16.msra.mxu0 %v713
        %753 = vmatprep.subr.bf16.mxu0 %v712
        %754 = vmatpush1.bf16.msra.mxu0 %v711
        %755 = vmatprep.subr.bf16.mxu0 %v710
        %756 = vmatpush1.bf16.msra.mxu0 %v709
        %757 = vmatprep.subr.bf16.mxu0 0
        %758 = vmatpush2.bf16.msra.mxu0 0
        %759 = vmatprep.subr.bf16.mxu0 0
        %760 = vmatpush2.bf16.msra.mxu0 0
        %761 = vmatprep.subr.bf16.mxu0 0
        %762 = vmatpush2.bf16.msra.mxu0 0
        %763 = vmatprep.subr.bf16.mxu0 0
        %764 = vmatpush2.bf16.msra.mxu0 0
        %765 = vmatprep.subr.bf16.mxu0 0
        %766 = vmatpush2.bf16.msra.mxu0 0
        %767 = vmatprep.subr.bf16.mxu0 0
        %768 = vmatpush2.bf16.msra.mxu0 0
        %769 = vmatprep.subr.bf16.mxu0 0
        %770 = vmatpush2.bf16.msra.mxu0 0
        %771 = vmatprep.subr.bf16.mxu0 0
        %772 = vmatpush2.bf16.msra.mxu0 0
        %773 = vmatprep.mubr.bf16.mxu0 0
        %774 = vmatmul.mubr.bf16.gmra.mxu0 %v632
        %v775 = vpop.f32.mrf.mxu0
        %v776 = vadd.f32 %v654, %v775
        %v777 = vpop.f32.mrf.mxu0
        %v778 = vadd.f32 %v658, %v777
        %v779 = vpop.f32.mrf.mxu0
        %v780 = vpop.f32.mrf.mxu0
        %781 = vdwg.mxu0
        %v782 = vtanh.pop %v776
        %v783 = vtanh.pop %v778
        %784 = vst [vmem:[%s405] sm:$0xff] %v782
        %785 = vst [vmem:[%s405 + $0x8] sm:$0xff] %v783
        %s786 = sand.u32 %s230, 1
        %s787 = scalar_lea.sflag [#allocation4], %s786
        %s788 = sand.u32 %s230, 1
        %s789 = smul.addr %s788, 16
        %s790 = scalar_lea.vmem [#allocation11], %s789
        // Predicated region
        $region77: #{tpu_custom_call.1} parent=55 // pred_check
          %p791 = pneg %p240
        $region78: #{tpu_custom_call.1} parent=55 // pred_check_branch
          %793 = sbr.rel (%p791) target = $region80
        $region79: #{tpu_custom_call.1} parent=55 // pred_region
          %s795 = ssub.s32 256, 256
          %796 = vsyncadd %s787, %s795
          %s797 = smul.addr %s28, 2
          %s798 = smul.addr %s797, 128
          %s799 = scalar_lea.hbm %s9, %s798
          %s801 = sshll.u32 %s790, 4
          %s802 = int_to_ptr.vmem [resolvable:$true] %s801
          %804 = dma.vmem_to_hbm [thread:$0]  %s802, 256, %s799, %s787
        $region80: #{tpu_custom_call.1} parent=55 // pred_fallthru
          _
      $region56: #{tpu_custom_call.1} parent=5 // pred_fallthru
        _
      %p805 = scmp.le.s32.totalorder 2, %s23
      // Predicated region
      $region81: #{tpu_custom_call.1} parent=5 // pred_check
        %p806 = pneg %p805
      $region82: #{tpu_custom_call.1} parent=5 // pred_check_branch
        %808 = sbr.rel (%p806) target = $region84
      $region83: #{tpu_custom_call.1} parent=5 // pred_region
        %s809 = ssub.s32 %s23, 2
        // Predicated region
        $region85: #{tpu_custom_call.1} parent=83 // pred_check
          %p810 = pneg %p246
        $region86: #{tpu_custom_call.1} parent=83 // pred_check_branch
          %812 = sbr.rel (%p810) target = $region88
        $region87: #{tpu_custom_call.1} parent=83 // pred_region
          %s813 = sand.u32 %s231, 1
          %s814 = scalar_lea.sflag [#allocation4], %s813
          %s815 = sand.u32 %s231, 1
          %s816 = smul.addr %s815, 16
          %s817 = scalar_lea.vmem [#allocation11], %s816
          %818 = dma.done %s814, 256
        $region88: #{tpu_custom_call.1} parent=83 // pred_fallthru
          _
      $region84: #{tpu_custom_call.1} parent=5 // pred_fallthru
        _
    $region6: #{tpu_custom_call.1} parent=1 // loop_footer
      %s27 = sadd.s32 1, %s23
    $region7: #{tpu_custom_call.1} parent=1 // loop_footer_branch
      %22 = sbr.rel target = $region3
    $region8: #{tpu_custom_call.1} parent=1 // loop_exit
      _
    %819 = vsyncpa [#allocation3], 1
    %s820 = scalar_lea.sflag [#allocation3], 1
    %821 = vsyncpa %s820, 1
    %822 = vsyncpa [#allocation6], 1
    %823 = vsyncpa [#allocation9], 1
    %824 = vsyncpa [#allocation4], 1
    %s825 = scalar_lea.sflag [#allocation4], 1
    %826 = vsyncpa %s825, 1

</llo_original>
